<compile_context>
chip_gen: v5e
topology: v5e:2x2
jax: 0.10.0
libtpu: 0.0.40
codegen_flags: <defaults>
</compile_context>

<pallas_src>
import jax
import jax.numpy as jnp
from jax.experimental import pallas as pl
from jax.experimental.pallas import tpu as pltpu


def _round_up(x: int, m: int) -> int:
    return ((x + m - 1) // m) * m


def reward_kernel(x_ref, w1_ref, b1_ref, w2_ref, b2_ref, o_ref):
    # Two MXU matmuls with f32 accumulation; bias add + ReLU stay in f32 on
    # the VPU.  x is cast to the weights' dtype inside the kernel (cheap VPU
    # work hidden under the DMA), so bf16 weights give a bf16 MXU pass with
    # no wrapper-side recast of x.
    x = x_ref[...].astype(w1_ref.dtype)
    h = jnp.dot(x, w1_ref[...], preferred_element_type=jnp.float32)   # (tm, Hp)
    h = jnp.maximum(h + b1_ref[...], 0.0)                             # f32 bias + ReLU
    y = jnp.dot(h.astype(w2_ref.dtype), w2_ref[...],
                preferred_element_type=jnp.float32)                   # (tm, N)
    o_ref[...] = (y + b2_ref[...]).astype(o_ref.dtype)


def prepare_reward_params(w1, b1, w2, b2, *, param_dtype=jnp.float32):
    """One-time parameter prep (hoisted out of the per-call path).

    Pads only the *hidden* dim of the resident weights to a lane multiple
    (128) so the intermediate h is lane-dense.  x's contraction dim, the
    output dim and the batch dim are never padded.  Weights may be cast to
    bf16 (halves resident VMEM and weight DMA on every generation, incl.
    v5e); biases stay f32 since bias-add / ReLU run in f32 on the VPU.

      w1: (in, hidden), b1: (1, hidden) or (hidden,),
      w2: (hidden, out), b2: (1, out) or (out,)
    """
    K, H = w1.shape
    H2, N = w2.shape
    assert H == H2, (w1.shape, w2.shape)
    b1 = jnp.asarray(b1).reshape(1, H)
    b2 = jnp.asarray(b2).reshape(1, N)
    Hp = _round_up(H, 128)   # keep at 128 multiples; do NOT chase 256 (guard)
    w1p = jnp.pad(w1, ((0, 0), (0, Hp - H))).astype(param_dtype)
    b1p = jnp.pad(b1, ((0, 0), (0, Hp - H))).astype(jnp.float32)
    w2p = jnp.pad(w2, ((0, Hp - H), (0, 0))).astype(param_dtype)
    b2p = b2.astype(jnp.float32)
    return w1p, b1p, w2p, b2p


def reward_forward(x, w1p, b1p, w2p, b2p, *, tile_m=2048):
    """x: (B, in) unpadded; params from `prepare_reward_params` -> (B, out) f32."""
    B, K = x.shape
    Kw, Hp = w1p.shape
    Hp2, N = w2p.shape
    assert K == Kw and Hp == Hp2
    assert b1p.shape == (1, Hp) and b2p.shape == (1, N)

    out_shape = jax.ShapeDtypeStruct((B, N), jnp.float32)

    # Advisory cost: x / out counted once at unpadded width, weights once.
    wbytes = (w1p.size * jnp.dtype(w1p.dtype).itemsize
              + w2p.size * jnp.dtype(w2p.dtype).itemsize
              + (b1p.size + b2p.size) * 4)
    cost = pl.CostEstimate(
        flops=2 * B * (K * Hp + Hp * N),
        transcendentals=0,
        bytes_accessed=x.size * jnp.dtype(x.dtype).itemsize + wbytes + B * N * 4,
    )

    n_tiles = pl.cdiv(B, tile_m)
    if n_tiles == 1 and B >= 512:
        # Whole batch fits one tile but is sizeable: split into 2 tiles so the
        # "parallel" batch axis can shard across v7x's two TensorCores
        # (no-op on single-TC v5e/v6e).
        tile_m = _round_up(pl.cdiv(B, 2), 8)
        n_tiles = pl.cdiv(B, tile_m)

    if n_tiles == 1:
        # Small-batch / launch-bound regime: a single gridless pallas_call —
        # no pipeline setup, everything resident in VMEM, no prep passes.
        return pl.pallas_call(
            reward_kernel,
            out_shape=out_shape,
            cost_estimate=cost,
        )(x, w1p, b1p, w2p, b2p)

    # Batch-tiled: x and out stream per grid step (unpadded K / N / B, the
    # final tile may be ragged); weights + biases stay resident in VMEM via a
    # constant index_map.
    return pl.pallas_call(
        reward_kernel,
        out_shape=out_shape,
        grid=(n_tiles,),
        in_specs=[
            pl.BlockSpec((tile_m, K), lambda i: (i, 0)),   # streamed x
            pl.BlockSpec((K, Hp), lambda i: (0, 0)),       # resident weights
            pl.BlockSpec((1, Hp), lambda i: (0, 0)),
            pl.BlockSpec((Hp, N), lambda i: (0, 0)),
            pl.BlockSpec((1, N), lambda i: (0, 0)),
        ],
        out_specs=pl.BlockSpec((tile_m, N), lambda i: (i, 0)),
        compiler_params=pltpu.CompilerParams(
            dimension_semantics=("parallel",)),
        cost_estimate=cost,
    )(x, w1p, b1p, w2p, b2p)


if __name__ == "__main__":
    # Small shapes consistent with the module's forward.
    batch = 8
    input_size = 32
    hidden_size = 64
    output_size = 8

    key = jax.random.PRNGKey(0)
    kx, kw1, kb1, kw2, kb2, kx2 = jax.random.split(key, 6)

    x = jax.random.normal(kx, (batch, input_size), dtype=jnp.float32)

    # Deterministic synthetic parameters (PyTorch-style fan_in scaling).
    bound1 = 1.0 / (input_size ** 0.5)
    bound2 = 1.0 / (hidden_size ** 0.5)
    w1 = jax.random.uniform(kw1, (input_size, hidden_size),
                            minval=-bound1, maxval=bound1, dtype=jnp.float32)
    b1 = jax.random.uniform(kb1, (1, hidden_size),
                            minval=-bound1, maxval=bound1, dtype=jnp.float32)
    w2 = jax.random.uniform(kw2, (hidden_size, output_size),
                            minval=-bound2, maxval=bound2, dtype=jnp.float32)
    b2 = jax.random.uniform(kb2, (1, output_size),
                            minval=-bound2, maxval=bound2, dtype=jnp.float32)

    def ref_fwd(xx):
        return jnp.maximum(xx @ w1 + b1, 0.0) @ w2 + b2

    # Parameter prep is done ONCE, outside the per-call path.
    params_f32 = prepare_reward_params(w1, b1, w2, b2)
    params_bf16 = prepare_reward_params(w1, b1, w2, b2,
                                        param_dtype=jnp.bfloat16)

    # 1) Small-batch gridless path (the module's actual regime), f32 — exact.
    out = jax.block_until_ready(reward_forward(x, *params_f32))
    assert out.shape == (batch, output_size)
    assert jnp.allclose(out, ref_fwd(x), atol=1e-5, rtol=1e-5)

    # 2) Batch-tiled path with a ragged final tile (weights resident, x and
    #    out streamed unpadded), f32 — exact.
    x_big = jax.random.normal(kx2, (600, input_size), dtype=jnp.float32)
    out_big = jax.block_until_ready(
        reward_forward(x_big, *params_f32, tile_m=256))   # 3 tiles, last = 88 rows
    assert out_big.shape == (600, output_size)
    assert jnp.allclose(out_big, ref_fwd(x_big), atol=1e-5, rtol=1e-5)

    # 3) bf16-weight path (valid on v5e/v6e/v7x; f32 accumulate) — loose check.
    out_bf16 = jax.block_until_ready(reward_forward(x, *params_bf16))
    assert out_bf16.shape == (batch, output_size)
    assert jnp.allclose(out_bf16, ref_fwd(x), atol=1e-1, rtol=1e-1)

    print("KERNEL_OK")
</pallas_src>

<mosaic_0001>
module attributes {stable_mosaic.version = 11 : i64} {
  func.func @reward_kernel(%arg0: memref<8x32xf32, #tpu.memory_space<vmem>>, %arg1: memref<32x128xf32, #tpu.memory_space<vmem>>, %arg2: memref<1x128xf32, #tpu.memory_space<vmem>>, %arg3: memref<128x8xf32, #tpu.memory_space<vmem>>, %arg4: memref<1x8xf32, #tpu.memory_space<vmem>>, %arg5: memref<8x8xf32, #tpu.memory_space<vmem>>) attributes {dimension_semantics = [], scalar_prefetch = 0 : i64, scratch_operands = 0 : i64, tpu.core_type = #tpu.core_type<tc>} {
    %c0 = arith.constant 0 : index
    %c0_0 = arith.constant 0 : index
    %0 = vector.load %arg0[%c0, %c0_0] : memref<8x32xf32, #tpu.memory_space<vmem>>, vector<8x32xf32>
    %c0_1 = arith.constant 0 : index
    %c0_2 = arith.constant 0 : index
    %1 = vector.load %arg1[%c0_1, %c0_2] : memref<32x128xf32, #tpu.memory_space<vmem>>, vector<32x128xf32>
    %cst = arith.constant dense<0.000000e+00> : vector<8x128xf32>
    %2 = tpu.matmul %0, %1, %cst {dimension_numbers = #tpu.dot_dimension_numbers<[1], [0], [0], [1], [0, 0, 1, 1], [], []>} : vector<8x32xf32>, vector<32x128xf32>, vector<8x128xf32> -> vector<8x128xf32>
    %c0_3 = arith.constant 0 : index
    %c0_4 = arith.constant 0 : index
    %3 = vector.load %arg2[%c0_3, %c0_4] : memref<1x128xf32, #tpu.memory_space<vmem>>, vector<1x128xf32>
    %4 = vector.broadcast %3 : vector<1x128xf32> to vector<8x128xf32>
    %5 = arith.addf %2, %4 : vector<8x128xf32>
    %cst_5 = arith.constant 0.000000e+00 : f32
    %6 = vector.broadcast %cst_5 : f32 to vector<8x128xf32>
    %7 = arith.maximumf %5, %6 : vector<8x128xf32>
    %c0_6 = arith.constant 0 : index
    %c0_7 = arith.constant 0 : index
    %8 = vector.load %arg3[%c0_6, %c0_7] : memref<128x8xf32, #tpu.memory_space<vmem>>, vector<128x8xf32>
    %cst_8 = arith.constant dense<0.000000e+00> : vector<8x8xf32>
    %9 = tpu.matmul %7, %8, %cst_8 {dimension_numbers = #tpu.dot_dimension_numbers<[1], [0], [0], [1], [0, 0, 1, 1], [], []>} : vector<8x128xf32>, vector<128x8xf32>, vector<8x8xf32> -> vector<8x8xf32>
    %c0_9 = arith.constant 0 : index
    %c0_10 = arith.constant 0 : index
    %10 = vector.load %arg4[%c0_9, %c0_10] : memref<1x8xf32, #tpu.memory_space<vmem>>, vector<1x8xf32>
    %11 = vector.broadcast %10 : vector<1x8xf32> to vector<8x8xf32>
    %12 = arith.addf %9, %11 : vector<8x8xf32>
    %c0_11 = arith.constant 0 : index
    %c0_12 = arith.constant 0 : index
    %13 = vector.load %arg5[%c0_11, %c0_12] : memref<8x8xf32, #tpu.memory_space<vmem>>, vector<8x8xf32>
    tpu.vector_store %arg5[%c0_11, %c0_12], %12 {strides = array<i32>} : memref<8x8xf32, #tpu.memory_space<vmem>>, vector<8x8xf32>,
    return
  }
}

</mosaic_0001>

<llo_original>
// kernel: tpu_custom_call.1
$region0: #{tpu_custom_call.1}
  #allocation0 [shape = 'u32[]', space=smem, size = 0x4, offset = 0x4, fixed_abs, tag = 'smem constant byte address 0x4 - core index']
  #allocation1 [shape = 'u32[72,128]{1,0:T(1,128)}', space=vmem, size = 0x9000, scoped, tag = 'internal scratch']
  %s0 = inlined_call_operand.vmem [shape: f32[8,32], index: 0, kind: input, shape index: {}]
  %s1 = inlined_call_operand.vmem [shape: f32[32,128], index: 1, kind: input, shape index: {}]
  %s2 = inlined_call_operand.vmem [shape: f32[1,128], index: 2, kind: input, shape index: {}]
  %s3 = inlined_call_operand.vmem [shape: f32[128,8], index: 3, kind: input, shape index: {}]
  %s4 = inlined_call_operand.vmem [shape: f32[1,8], index: 4, kind: input, shape index: {}]
  %s5 = inlined_call_operand.hbm [shape: f32[8,8], index: 5, kind: output, shape index: {}]
  %s6 = sld [smem:[#allocation0]]
  $region30: #{tpu_custom_call.1} parent=0
    _
  %s8 = ssub.s32 1, %s6
  %s9 = scalar_select 0, %s8, %s6
  $region1: #{tpu_custom_call.1} parent=0
    #allocation2 [shape = 'u8[4096]{0}', space=vmem, size = 0x1000, scoped, tag = 'output window, operand 0, single buffered']
    #allocation3 [shape = 's32[1]{0}', space=sflag, size = 0x4, scoped, tag = 'scoped memory for tpu_custom_call.1']
    %10 = vsyncpa [#allocation3], 0
    // Predicated region
    $region2: #{tpu_custom_call.1} parent=1 // pred_check
      _
    $region3: #{tpu_custom_call.1} parent=1 // pred_check_branch
      %12 = sbr.rel (0) target = $region5
    $region4: #{tpu_custom_call.1} parent=1 // pred_region
      _
    $region5: #{tpu_custom_call.1} parent=1 // pred_fallthru
      _
    // Predicated region
    $region6: #{tpu_custom_call.1} parent=1 // pred_check
      _
    $region7: #{tpu_custom_call.1} parent=1 // pred_check_branch
      %14 = sbr.rel (0) target = $region9
    $region8: #{tpu_custom_call.1} parent=1 // pred_region
      _
    $region9: #{tpu_custom_call.1} parent=1 // pred_fallthru
      _
    // Predicated region
    $region10: #{tpu_custom_call.1} parent=1 // pred_check
      _
    $region11: #{tpu_custom_call.1} parent=1 // pred_check_branch
      %16 = sbr.rel (0) target = $region13
    $region12: #{tpu_custom_call.1} parent=1 // pred_region
      _
    $region13: #{tpu_custom_call.1} parent=1 // pred_fallthru
      _
    // Predicated region
    $region14: #{tpu_custom_call.1} parent=1 // pred_check
      _
    $region15: #{tpu_custom_call.1} parent=1 // pred_check_branch
      %18 = sbr.rel (0) target = $region17
    $region16: #{tpu_custom_call.1} parent=1 // pred_region
      _
    $region17: #{tpu_custom_call.1} parent=1 // pred_fallthru
      _
    // Predicated region
    $region18: #{tpu_custom_call.1} parent=1 // pred_check
      _
    $region19: #{tpu_custom_call.1} parent=1 // pred_check_branch
      %20 = sbr.rel (0) target = $region21
    $region20: #{tpu_custom_call.1} parent=1 // pred_region
      _
    $region21: #{tpu_custom_call.1} parent=1 // pred_fallthru
      _
    %v21 = vld [vmem:[%s0] sm:$0xff]
    %v22 = vld [vmem:[%s1] sm:$0xff]
    %v23 = vld [vmem:[%s1 + $0x8] sm:$0xff]
    %v24 = vld [vmem:[%s1 + $0x10] sm:$0xff]
    %v25 = vld [vmem:[%s1 + $0x18] sm:$0xff]
    %v26 = vld [vmem:[%s2] sm:$0x1]
    %v28 = vperm.slane %v26, 0
    %vm30 = vcmask 261120
    %v32 = vsel %vm30, %v21, 0
    %34 = vmatpush.msra.mxu0 0.0
    %35 = vmatpush.msra.mxu0 0.0
    %36 = vmatpush.msra.mxu0 0.0
    %37 = vmatpush.msra.mxu0 0.0
    %38 = vmatpush.msra.mxu0 0.0
    %39 = vmatpush.msra.mxu0 0.0
    %40 = vmatpush.msra.mxu0 0.0
    %41 = vmatpush.msra.mxu0 0.0
    %42 = vmatpush.msra.mxu0 0.0
    %43 = vmatpush.msra.mxu0 0.0
    %44 = vmatpush.msra.mxu0 0.0
    %45 = vmatpush.msra.mxu0 0.0
    %46 = vmatpush.msra.mxu0 %v25
    %47 = vmatpush.msra.mxu0 %v24
    %48 = vmatpush.msra.mxu0 %v23
    %49 = vmatpush.msra.mxu0 %v22
    %50 = vmatmul.f32.gmra.mxu0 %v32
    %v51 = vpop.f32.mrf.mxu0
    %v52 = vadd.f32 %v28, %v51
    %53 = vdwg.mxu0
    %v54 = vmax.f32 %v52, 0.0
    %v55 = vld [vmem:[%s3] sm:$0xff]
    %v56 = vld [vmem:[%s3 + $0x8] sm:$0xff]
    %v57 = vld [vmem:[%s3 + $0x10] sm:$0xff]
    %v58 = vld [vmem:[%s3 + $0x18] sm:$0xff]
    %v59 = vld [vmem:[%s3 + $0x20] sm:$0xff]
    %v60 = vld [vmem:[%s3 + $0x28] sm:$0xff]
    %v61 = vld [vmem:[%s3 + $0x30] sm:$0xff]
    %v62 = vld [vmem:[%s3 + $0x38] sm:$0xff]
    %v63 = vld [vmem:[%s3 + $0x40] sm:$0xff]
    %v64 = vld [vmem:[%s3 + $0x48] sm:$0xff]
    %v65 = vld [vmem:[%s3 + $0x50] sm:$0xff]
    %v66 = vld [vmem:[%s3 + $0x58] sm:$0xff]
    %v67 = vld [vmem:[%s3 + $0x60] sm:$0xff]
    %v68 = vld [vmem:[%s3 + $0x68] sm:$0xff]
    %v69 = vld [vmem:[%s3 + $0x70] sm:$0xff]
    %v70 = vld [vmem:[%s3 + $0x78] sm:$0xff]
    %v71 = vld [vmem:[%s4] sm:$0x1]
    %v73 = vperm.slane %v71, 0
    %75 = vmatpush.msra.mxu0 %v70
    %76 = vmatpush.msra.mxu0 %v69
    %77 = vmatpush.msra.mxu0 %v68
    %78 = vmatpush.msra.mxu0 %v67
    %79 = vmatpush.msra.mxu0 %v66
    %80 = vmatpush.msra.mxu0 %v65
    %81 = vmatpush.msra.mxu0 %v64
    %82 = vmatpush.msra.mxu0 %v63
    %83 = vmatpush.msra.mxu0 %v62
    %84 = vmatpush.msra.mxu0 %v61
    %85 = vmatpush.msra.mxu0 %v60
    %86 = vmatpush.msra.mxu0 %v59
    %87 = vmatpush.msra.mxu0 %v58
    %88 = vmatpush.msra.mxu0 %v57
    %89 = vmatpush.msra.mxu0 %v56
    %90 = vmatpush.msra.mxu0 %v55
    %91 = vmatmul.f32.gmra.mxu0 %v54
    %v92 = vpop.f32.mrf.mxu0
    %v93 = vadd.f32 %v73, %v92
    %94 = vdwg.mxu0
    %vm95 = vcmask 64512
    %96 = vst.msk [vmem:[#allocation2] sm:$0xff] %vm95, %v93
    // Predicated region
    $region22: #{tpu_custom_call.1} parent=1 // pred_check
      _
    $region23: #{tpu_custom_call.1} parent=1 // pred_check_branch
      %98 = sbr.rel (0) target = $region25
    $region24: #{tpu_custom_call.1} parent=1 // pred_region
      %100 = vsyncadd [#allocation3], 0
      %s102 = sshll.u32 [#allocation2], 4
      %s103 = int_to_ptr.vmem [resolvable:$true] %s102
      %s104 = sshll.u32 %s5, 4
      %s105 = int_to_ptr.hbm [resolvable:$true] %s104
      %107 = dma.vmem_to_hbm [thread:$0]  %s103, 128, %s105, [#allocation3]
    $region25: #{tpu_custom_call.1} parent=1 // pred_fallthru
      _
    // Predicated region
    $region26: #{tpu_custom_call.1} parent=1 // pred_check
      _
    $region27: #{tpu_custom_call.1} parent=1 // pred_check_branch
      %109 = sbr.rel (0) target = $region29
    $region28: #{tpu_custom_call.1} parent=1 // pred_region
      %111 = dma.done [#allocation3], 128
    $region29: #{tpu_custom_call.1} parent=1 // pred_fallthru
      _
    %112 = vsyncpa [#allocation3], 1

</llo_original>
